<compile_context>
chip_gen: v7x
topology: tpu7x:2x2x1
jax: 0.10.0
libtpu: 0.0.40
codegen_flags: <defaults>
</compile_context>

<pallas_src>
import math
import jax
import jax.numpy as jnp
from jax.experimental import pallas as pl
from jax.experimental.pallas import tpu as pltpu


def make_positional_encoding(d_model: int, max_len: int = 50) -> jnp.ndarray:
    """Deterministic sin/cos table, exactly mirroring the PyTorch __init__ (f32)."""
    positions = jnp.arange(0, max_len, dtype=jnp.float32)[:, None]            # (max_len, 1)
    div_term = jnp.exp(
        jnp.arange(0, d_model, 2, dtype=jnp.float32) * (-math.log(10000.0) / d_model)
    )                                                                          # (ceil(d/2),)
    angles = positions * div_term                                              # (max_len, ceil(d/2))
    pe = jnp.zeros((max_len, d_model), dtype=jnp.float32)
    pe = pe.at[:, 0::2].set(jnp.sin(angles))
    pe = pe.at[:, 1::2].set(jnp.cos(angles)[:, : d_model // 2])
    return pe


def _pe_add_kernel(x_ref, pe_ref, o_ref):
    # x_ref / o_ref: (TB, TN) tile of the flattened (B, S*D) activation.
    # pe_ref:        (1, TN) (or (1, N) resident) tile of the flattened positional
    #                table; broadcasts over the batch rows (cheap sublane broadcast).
    o_ref[...] = x_ref[...] + pe_ref[...]


def _vmem_budget():
    """(tile_bytes per buffer, vmem_limit_bytes) chosen from the chip's VMEM size."""
    cap = 64 * 1024 * 1024
    try:
        info = pltpu.get_tpu_info()
        cap = int(getattr(info, "vmem_capacity_bytes", cap))
    except Exception:
        pass
    if cap >= 96 * 1024 * 1024:
        # v5e / v6e: 128 MiB physical VMEM -> bigger tiles, fewer grid steps.
        return 12 * 1024 * 1024, 64 * 1024 * 1024
    # v7x: 64 MiB per TC -> keep ~4 MiB tiles, <=32 MiB scoped limit.
    return 4 * 1024 * 1024, 32 * 1024 * 1024


def _pick_tiles(B: int, N: int, itemsize: int, tile_bytes: int):
    """Pick a (TB, TN) block: lane dim multiple of 128 (or full N), batch dim a
    multiple of the dtype's packed sublane count (or full B), ~tile_bytes/buffer."""
    sub = max(8, 32 // max(itemsize, 1))          # 8 rows f32, 16 bf16, 32 int8/fp8
    block_elems = max(128, tile_bytes // itemsize)
    min_rows = sub if B >= sub else max(B, 1)
    tn_cap = max(128, ((block_elems // min_rows) // 128) * 128)
    TN = N if N <= tn_cap else tn_cap
    rows_budget = max(1, block_elems // TN)
    if B <= rows_budget:
        TB = B
    elif B >= sub:
        TB = max(sub, (rows_budget // sub) * sub)
    else:
        TB = B
    return TB, TN


def positional_encoding_forward(x: jnp.ndarray, pe_flat: jnp.ndarray, *, in_place: bool = False):
    """x: (B, S, D); pe_flat: (1, S*D) already cast to x.dtype. Returns x + pe."""
    B, S, D = x.shape
    N = S * D
    if pe_flat.shape != (1, N):
        raise ValueError(f"pe_flat shape {pe_flat.shape} != (1, {N})")
    if pe_flat.dtype != x.dtype:
        pe_flat = pe_flat.astype(x.dtype)

    itemsize = jnp.dtype(x.dtype).itemsize
    tile_bytes, vmem_limit = _vmem_budget()
    TB, TN = _pick_tiles(B, N, itemsize, tile_bytes)
    nB = pl.cdiv(B, TB)
    nN = pl.cdiv(N, TN)

    x2 = x.reshape(B, N)
    pe_resident = (N * itemsize) <= tile_bytes

    if pe_resident:
        # Whole PE row stays in VMEM; constant index_map -> DMA'd exactly once.
        pe_spec = pl.BlockSpec((1, N), lambda a, b: (0, 0))
        if nN >= nB:
            # Lead with the lane axis (usually more tiles) for v7x megacore sharding.
            grid = (nN, nB)
            x_spec = pl.BlockSpec((TB, TN), lambda ni, bi: (bi, ni))
            o_spec = pl.BlockSpec((TB, TN), lambda ni, bi: (bi, ni))
        else:
            grid = (nB, nN)
            x_spec = pl.BlockSpec((TB, TN), lambda bi, ni: (bi, ni))
            o_spec = pl.BlockSpec((TB, TN), lambda bi, ni: (bi, ni))
    else:
        # Tile PE along lanes; lane axis leads so the PE block index is constant
        # across the inner batch loop -> Pallas skips the re-DMA (PE read once).
        grid = (nN, nB)
        x_spec = pl.BlockSpec((TB, TN), lambda ni, bi: (bi, ni))
        pe_spec = pl.BlockSpec((1, TN), lambda ni, bi: (0, ni))
        o_spec = pl.BlockSpec((TB, TN), lambda ni, bi: (bi, ni))

    out2 = pl.pallas_call(
        _pe_add_kernel,
        out_shape=jax.ShapeDtypeStruct((B, N), x.dtype),
        grid=grid,
        in_specs=[x_spec, pe_spec],
        out_specs=o_spec,
        compiler_params=pltpu.CompilerParams(
            dimension_semantics=("parallel", "parallel"),
            vmem_limit_bytes=vmem_limit,
        ),
        cost_estimate=pl.CostEstimate(
            flops=B * N,
            transcendentals=0,
            bytes_accessed=(2 * B * N + N) * itemsize,
        ),
        input_output_aliases=({0: 0} if in_place else {}),
    )(x2, pe_flat)

    return out2.reshape(B, S, D)


class PositionalEncoding:
    """Mirrors the PyTorch module: builds the table once, caches the flattened
    dtype-cast row per (seq_len, dtype) so forward calls do no extra host-side work."""

    def __init__(self, d_model: int, max_len: int = 50):
        self.d_model = d_model
        self.max_len = max_len
        self.pe_table = make_positional_encoding(d_model, max_len)   # (max_len, d_model) f32
        self._flat_cache = {}

    def _pe_flat(self, seq_len: int, dtype) -> jnp.ndarray:
        key = (seq_len, jnp.dtype(dtype).name)
        if key not in self._flat_cache:
            self._flat_cache[key] = (
                self.pe_table[:seq_len, :].astype(dtype).reshape(1, seq_len * self.d_model)
            )
        return self._flat_cache[key]

    def __call__(self, x: jnp.ndarray, *, in_place: bool = False) -> jnp.ndarray:
        B, S, D = x.shape
        if S > self.max_len:
            raise ValueError(f"seq_len={S} exceeds max_len={self.max_len}")
        if D != self.d_model:
            raise ValueError(f"d_model mismatch: x has {D}, module has {self.d_model}")
        return positional_encoding_forward(x, self._pe_flat(S, x.dtype), in_place=in_place)


if __name__ == "__main__":
    d_model = 32
    max_len = 50
    batch = 2
    seq_len = 8

    module = PositionalEncoding(d_model, max_len)

    key = jax.random.PRNGKey(0)
    x = jax.random.normal(key, (batch, seq_len, d_model), dtype=jnp.float32)

    # pure-JAX reference
    ref = x + module.pe_table[:seq_len, :][None, :, :].astype(x.dtype)

    out = module(x)
    out = jax.block_until_ready(out)

    assert out.shape == (batch, seq_len, d_model)
    assert jnp.allclose(out, ref, atol=1e-6), "mismatch vs reference"

    print("KERNEL_OK")
</pallas_src>

<mosaic_0001>
module attributes {stable_mosaic.version = 11 : i64} {
  func.func @_pe_add_kernel(%arg0: i32, %arg1: i32, %arg2: memref<2x256xf32, #tpu.memory_space<vmem>>, %arg3: memref<1x256xf32, #tpu.memory_space<vmem>>, %arg4: memref<2x256xf32, #tpu.memory_space<vmem>>) attributes {dimension_semantics = [#tpu.dimension_semantics<parallel>, #tpu.dimension_semantics<parallel>], iteration_bounds = array<i64: 1, 1>, scalar_prefetch = 0 : i64, scratch_operands = 0 : i64, tpu.core_type = #tpu.core_type<tc>, window_params = [{transform_indices = @transform_0, window_bounds = array<i64: 2, 256>}, {pipeline_mode = #tpu.pipeline_mode<synchronous>, transform_indices = @transform_1, window_bounds = array<i64: 1, 256>}, {transform_indices = @transform_2, window_bounds = array<i64: 2, 256>}]} {
    %c0 = arith.constant 0 : index
    %c0_0 = arith.constant 0 : index
    %0 = vector.load %arg2[%c0, %c0_0] : memref<2x256xf32, #tpu.memory_space<vmem>>, vector<2x256xf32>
    %c0_1 = arith.constant 0 : index
    %c0_2 = arith.constant 0 : index
    %1 = vector.load %arg3[%c0_1, %c0_2] : memref<1x256xf32, #tpu.memory_space<vmem>>, vector<1x256xf32>
    %2 = vector.broadcast %1 : vector<1x256xf32> to vector<2x256xf32>
    %3 = arith.addf %0, %2 : vector<2x256xf32>
    %c0_3 = arith.constant 0 : index
    %c0_4 = arith.constant 0 : index
    %4 = vector.load %arg4[%c0_3, %c0_4] : memref<2x256xf32, #tpu.memory_space<vmem>>, vector<2x256xf32>
    tpu.vector_store %arg4[%c0_3, %c0_4], %3 {strides = array<i32>} : memref<2x256xf32, #tpu.memory_space<vmem>>, vector<2x256xf32>,
    return
  }
  func.func @transform_0(%arg0: i32, %arg1: i32) -> (i32, i32) {
    %c0_i32 = arith.constant 0 : i32
    return %arg1, %arg0 : i32, i32
  }
  func.func @transform_1(%arg0: i32, %arg1: i32) -> (i32, i32) {
    %c0_i32 = arith.constant 0 : i32
    %c0_i32_0 = arith.constant 0 : i32
    %c0_i32_1 = arith.constant 0 : i32
    return %c0_i32, %c0_i32_0 : i32, i32
  }
  func.func @transform_2(%arg0: i32, %arg1: i32) -> (i32, i32) {
    %c0_i32 = arith.constant 0 : i32
    return %arg1, %arg0 : i32, i32
  }
}

</mosaic_0001>

<llo_original>
// kernel: tpu_custom_call.1
$region0: #{tpu_custom_call.1}
  #allocation0 [shape = 'u32[]', space=smem, size = 0x4, offset = 0x4, fixed_abs, tag = 'smem constant byte address 0x4 - core index']
  #allocation1 [shape = 'u32[144,128]{1,0:T(1,128)}', space=vmem, size = 0x12000, scoped, tag = 'internal scratch']
  %s0 = inlined_call_operand.hbm [shape: f32[2,256], index: 0, kind: input, shape index: {}]
  %s1 = inlined_call_operand.vmem [shape: f32[1,256], index: 1, kind: input, shape index: {}]
  %s2 = inlined_call_operand.hbm [shape: f32[2,256], index: 2, kind: output, shape index: {}]
  %s3 = sld [smem:[#allocation0]]
  $region22: #{tpu_custom_call.1} parent=0
    _
  %s5 = ssub.s32 1, %s3
  %s6 = scalar_select 0, %s5, %s3
  $region1: #{tpu_custom_call.1} parent=0
    #allocation2 [shape = 'u8[2048]{0}', space=vmem, size = 0x800, scoped, tag = 'input window, operand 0, single buffered']
    #allocation3 [shape = 's32[1]{0}', space=sflag, size = 0x4, scoped, tag = 'scoped memory for tpu_custom_call.1']
    #allocation4 [shape = 's32[1]{0}', space=sflag, size = 0x4, scoped, tag = 'scoped memory for tpu_custom_call.1']
    #allocation5 [shape = 'u8[2048]{0}', space=vmem, size = 0x800, scoped, tag = 'output window, operand 0, single buffered']
    %7 = vsyncpa [#allocation3], 0
    %8 = vsyncpa [#allocation4], 0
    // Predicated region
    $region2: #{tpu_custom_call.1} parent=1 // pred_check
      _
    $region3: #{tpu_custom_call.1} parent=1 // pred_check_branch
      %10 = sbr.rel (0) target = $region5
    $region4: #{tpu_custom_call.1} parent=1 // pred_region
      %s12 = ssub.s32 64, 64
      %13 = vsyncadd [#allocation3], %s12
      %s15 = sshll.u32 [#allocation2], 4
      %s16 = int_to_ptr.vmem [resolvable:$true] %s15
      %18 = dma.hbm_to_vmem [thread:$0]  %s0, 64, %s16, [#allocation3]
    $region5: #{tpu_custom_call.1} parent=1 // pred_fallthru
      _
    // Predicated region
    $region6: #{tpu_custom_call.1} parent=1 // pred_check
      _
    $region7: #{tpu_custom_call.1} parent=1 // pred_check_branch
      %20 = sbr.rel (0) target = $region9
    $region8: #{tpu_custom_call.1} parent=1 // pred_region
      _
    $region9: #{tpu_custom_call.1} parent=1 // pred_fallthru
      _
    // Predicated region
    $region10: #{tpu_custom_call.1} parent=1 // pred_check
      _
    $region11: #{tpu_custom_call.1} parent=1 // pred_check_branch
      %22 = sbr.rel (0) target = $region13
    $region12: #{tpu_custom_call.1} parent=1 // pred_region
      %23 = dma.done [#allocation3], 64
    $region13: #{tpu_custom_call.1} parent=1 // pred_fallthru
      _
    %v24 = vld [vmem:[#allocation2] sm:$0xf]
    %v25 = vld [vmem:[%s1] sm:$0x3]
    %v27 = vlaneseq
    %v28 = vshrl.u32 %v27, 7
    %v29 = vsub.s32 0, %v28
    %v30 = vrot.slane %v25, %v29
    %v31 = vlaneseq
    %v32 = vshrl.u32 %v31, 7
    %v33 = vsub.s32 1, %v32
    %v34 = vrot.slane %v25, %v33
    %v35 = vcombine.low %v30, %v34
    %v37 = vunpack.c.l.s4 1983009808
    %v38 = vunpack.c.0.s8 %v37
    %v39 = vlaneseq
    %v40 = vshrl.u32 %v39, 7
    %v41 = vsub.s32 %v38, %v40
    %v42 = vrot.slane %v35, %v41
    %v44 = vadd.f32 %v24, %v42
    %45 = vst [vmem:[#allocation5] sm:$0xf] %v44
    // Predicated region
    $region14: #{tpu_custom_call.1} parent=1 // pred_check
      _
    $region15: #{tpu_custom_call.1} parent=1 // pred_check_branch
      %47 = sbr.rel (0) target = $region17
    $region16: #{tpu_custom_call.1} parent=1 // pred_region
      %s49 = ssub.s32 64, 64
      %50 = vsyncadd [#allocation4], %s49
      %s52 = sshll.u32 [#allocation5], 4
      %s53 = int_to_ptr.vmem [resolvable:$true] %s52
      %55 = dma.vmem_to_hbm [thread:$0]  %s53, 64, %s2, [#allocation4]
    $region17: #{tpu_custom_call.1} parent=1 // pred_fallthru
      _
    // Predicated region
    $region18: #{tpu_custom_call.1} parent=1 // pred_check
      _
    $region19: #{tpu_custom_call.1} parent=1 // pred_check_branch
      %57 = sbr.rel (0) target = $region21
    $region20: #{tpu_custom_call.1} parent=1 // pred_region
      %58 = dma.done [#allocation4], 64
    $region21: #{tpu_custom_call.1} parent=1 // pred_fallthru
      _
    %59 = vsyncpa [#allocation3], 1
    %60 = vsyncpa [#allocation4], 1

</llo_original>
